<compile_context>
chip_gen: v7x
topology: tpu7x:2x2x1
jax: 0.10.0
libtpu: 0.0.40
codegen_flags: <defaults>
</compile_context>

<pallas_src>
import functools

import jax
import jax.numpy as jnp
from jax.experimental import pallas as pl
from jax.experimental.pallas import tpu as pltpu


def _round_up(x, m):
    return ((x + m - 1) // m) * m


def _round_down(x, m):
    return (x // m) * m


# ----------------------------- Pallas kernel ------------------------------

def _contrastive_loss_kernel(o1_ref, o2_ref, lbl_ref, loss_ref, *,
                             margin, eps, n_valid, tb):
    i = pl.program_id(0)

    # In-kernel cast: inputs may be bf16; the cast is a cheap VPU op and avoids a
    # separate XLA upcast pass over HBM in the wrapper.
    o1 = o1_ref[...].astype(jnp.float32)                    # [tb, D]
    o2 = o2_ref[...].astype(jnp.float32)                    # [tb, D]
    lbl = lbl_ref[...].astype(jnp.float32)                  # [tb, 1]

    diff = o1 - o2 + eps                                    # VPU
    d2 = jnp.sum(diff * diff, axis=-1, keepdims=True)       # [tb, 1] row-reduce (XLU)
    d = jnp.sqrt(d2)

    hinge = jnp.maximum(margin - d, 0.0)
    per_row = lbl * d2 + (1.0 - lbl) * (hinge * hinge)      # [tb, 1]

    # Ragged last tile: rows >= n_valid read unspecified data; zero them so the
    # per-row output (and the mean computed from it) is safe even if that data
    # were NaN. (The out-of-bounds rows are also masked on writeback.)
    rows = i * tb + jax.lax.broadcasted_iota(jnp.int32, per_row.shape, 0)
    per_row = jnp.where(rows < n_valid, per_row, 0.0)

    loss_ref[...] = per_row


# ----------------------------- wrapper ------------------------------

def contrastive_loss(output1, output2, label, *, margin=1.0, eps=1e-6,
                     target_block_bytes=2 * 1024 * 1024):
    """Pallas equivalent of ContrastiveLoss.forward (returns a scalar f32)."""
    B, D = output1.shape
    assert output2.shape == (B, D)
    lbl = label
    if lbl.ndim == 1:
        lbl = lbl[:, None]
    assert lbl.shape == (B, 1)

    # Row tile sized by bytes: ~target_block_bytes per embedding input block,
    # multiple of 8 sublanes, capped at the (rounded-up) batch size.
    itemsize = jnp.dtype(output1.dtype).itemsize
    rows_fit = max(8, target_block_bytes // max(1, D * itemsize))
    tb = max(8, _round_down(rows_fit, 8))
    tb = min(tb, _round_up(B, 8))
    num_tiles = pl.cdiv(B, tb)

    kernel = functools.partial(
        _contrastive_loss_kernel,
        margin=float(margin), eps=float(eps), n_valid=B, tb=tb,
    )

    per_row = pl.pallas_call(
        kernel,
        grid=(num_tiles,),
        in_specs=[
            pl.BlockSpec((tb, D), lambda i: (i, 0)),
            pl.BlockSpec((tb, D), lambda i: (i, 0)),
            pl.BlockSpec((tb, 1), lambda i: (i, 0)),
        ],
        out_specs=pl.BlockSpec((tb, 1), lambda i: (i, 0)),
        out_shape=jax.ShapeDtypeStruct((B, 1), jnp.float32),
        compiler_params=pltpu.CompilerParams(
            dimension_semantics=("parallel",)),
    )(output1, output2, lbl)

    # Final mean over B floats: tiny, done in plain JAX so the grid axis stays
    # fully parallel (v7x dual-TensorCore friendly).
    return jnp.mean(per_row)


# ----------------------------- reference (pure JAX) ------------------------------

def contrastive_loss_ref(o1, o2, label, margin=1.0, eps=1e-6):
    o1 = o1.astype(jnp.float32)
    o2 = o2.astype(jnp.float32)
    label = label.astype(jnp.float32).reshape(-1, 1)
    d = jnp.sqrt(jnp.sum((o1 - o2 + eps) ** 2, axis=-1, keepdims=True))
    sq = d ** 2
    msq = jnp.maximum(margin - d, 0.0) ** 2
    return jnp.mean(label * sq + (1.0 - label) * msq)


# ----------------------------- main ------------------------------

if __name__ == "__main__":
    key = jax.random.PRNGKey(0)
    k1, k2, k3 = jax.random.split(key, 3)

    # Case 1: small ragged batch (not multiples of 8/128), single tile, f32.
    B, D = 6, 96
    output1 = jax.random.normal(k1, (B, D), jnp.float32)
    output2 = jax.random.normal(k2, (B, D), jnp.float32)
    label = jax.random.bernoulli(k3, 0.5, (B, 1)).astype(jnp.float32)

    loss = contrastive_loss(output1, output2, label, margin=1.0)
    jax.block_until_ready(loss)
    ref = contrastive_loss_ref(output1, output2, label, margin=1.0)
    assert loss.shape == () and loss.dtype == jnp.float32
    assert bool(jnp.isfinite(loss))
    assert bool(jnp.allclose(loss, ref, rtol=1e-5, atol=1e-6)), (loss, ref)

    # Case 2: multi-tile grid with a ragged last tile, bf16 inputs (native-dtype
    # streaming + in-kernel cast path). Small target_block_bytes forces tb=16.
    B2, D2 = 50, 96
    k4, k5, k6 = jax.random.split(jax.random.PRNGKey(1), 3)
    o1b = jax.random.normal(k4, (B2, D2), jnp.float32).astype(jnp.bfloat16)
    o2b = jax.random.normal(k5, (B2, D2), jnp.float32).astype(jnp.bfloat16)
    lblb = jax.random.bernoulli(k6, 0.5, (B2, 1)).astype(jnp.float32)

    loss2 = contrastive_loss(o1b, o2b, lblb, margin=1.0,
                             target_block_bytes=D2 * 2 * 16)  # -> tb=16, 4 tiles
    jax.block_until_ready(loss2)
    ref2 = contrastive_loss_ref(o1b, o2b, lblb, margin=1.0)
    assert bool(jnp.isfinite(loss2))
    assert bool(jnp.allclose(loss2, ref2, rtol=1e-4, atol=1e-5)), (loss2, ref2)

    print("KERNEL_OK")
</pallas_src>

<mosaic_0001>
module attributes {stable_mosaic.version = 11 : i64} {
  func.func @_contrastive_loss_kernel(%arg0: i32, %arg1: memref<8x96xf32, #tpu.memory_space<vmem>>, %arg2: memref<8x96xf32, #tpu.memory_space<vmem>>, %arg3: memref<8x1xf32, #tpu.memory_space<vmem>>, %arg4: memref<8x1xf32, #tpu.memory_space<vmem>>) attributes {dimension_semantics = [#tpu.dimension_semantics<parallel>], iteration_bounds = array<i64: 1>, scalar_prefetch = 0 : i64, scratch_operands = 0 : i64, tpu.core_type = #tpu.core_type<tc>, window_params = [{transform_indices = @transform_0, window_bounds = array<i64: 8, 96>}, {transform_indices = @transform_1, window_bounds = array<i64: 8, 96>}, {transform_indices = @transform_2, window_bounds = array<i64: 8, 1>}, {transform_indices = @transform_3, window_bounds = array<i64: 8, 1>}]} {
    %c0 = arith.constant 0 : index
    %c0_0 = arith.constant 0 : index
    %0 = vector.load %arg1[%c0, %c0_0] : memref<8x96xf32, #tpu.memory_space<vmem>>, vector<8x96xf32>
    %c0_1 = arith.constant 0 : index
    %c0_2 = arith.constant 0 : index
    %1 = vector.load %arg2[%c0_1, %c0_2] : memref<8x96xf32, #tpu.memory_space<vmem>>, vector<8x96xf32>
    %c0_3 = arith.constant 0 : index
    %c0_4 = arith.constant 0 : index
    %2 = vector.load %arg3[%c0_3, %c0_4] : memref<8x1xf32, #tpu.memory_space<vmem>>, vector<8x1xf32>
    %3 = arith.subf %0, %1 : vector<8x96xf32>
    %cst = arith.constant 9.99999997E-7 : f32
    %4 = vector.broadcast %cst : f32 to vector<8x96xf32>
    %5 = arith.addf %3, %4 : vector<8x96xf32>
    %6 = arith.mulf %5, %5 : vector<8x96xf32>
    %cst_5 = arith.constant dense<0.000000e+00> : vector<8xf32>
    %7 = vector.multi_reduction <add>, %6, %cst_5 [1] : vector<8x96xf32> to vector<8xf32>
    %8 = vector.shape_cast %7 : vector<8xf32> to vector<8x1xf32>
    %9 = math.sqrt %8 : vector<8x1xf32>
    %cst_6 = arith.constant 1.000000e+00 : f32
    %10 = vector.broadcast %cst_6 : f32 to vector<8x1xf32>
    %11 = arith.subf %10, %9 : vector<8x1xf32>
    %cst_7 = arith.constant 0.000000e+00 : f32
    %12 = vector.broadcast %cst_7 : f32 to vector<8x1xf32>
    %13 = arith.maximumf %11, %12 : vector<8x1xf32>
    %14 = arith.mulf %2, %8 : vector<8x1xf32>
    %cst_8 = arith.constant 1.000000e+00 : f32
    %15 = vector.broadcast %cst_8 : f32 to vector<8x1xf32>
    %16 = arith.subf %15, %2 : vector<8x1xf32>
    %17 = arith.mulf %13, %13 : vector<8x1xf32>
    %18 = arith.mulf %16, %17 : vector<8x1xf32>
    %19 = arith.addf %14, %18 : vector<8x1xf32>
    %c8_i32 = arith.constant 8 : i32
    %20 = arith.muli %arg0, %c8_i32 : i32
    %21 = tpu.iota {dimensions = array<i32: 0>} : vector<8x1xi32>
    %22 = vector.broadcast %20 : i32 to vector<8x1xi32>
    %23 = arith.addi %22, %21 : vector<8x1xi32>
    %c6_i32 = arith.constant 6 : i32
    %24 = vector.broadcast %c6_i32 : i32 to vector<8x1xi32>
    %25 = arith.cmpi slt, %23, %24 : vector<8x1xi32>
    %cst_9 = arith.constant 0.000000e+00 : f32
    %26 = vector.broadcast %cst_9 : f32 to vector<8x1xf32>
    %27 = arith.select %25, %19, %26 : vector<8x1xi1>, vector<8x1xf32>
    %c0_10 = arith.constant 0 : index
    %c0_11 = arith.constant 0 : index
    %28 = vector.load %arg4[%c0_10, %c0_11] : memref<8x1xf32, #tpu.memory_space<vmem>>, vector<8x1xf32>
    tpu.vector_store %arg4[%c0_10, %c0_11], %27 {strides = array<i32>} : memref<8x1xf32, #tpu.memory_space<vmem>>, vector<8x1xf32>,
    return
  }
  func.func @transform_0(%arg0: i32) -> (i32, i32) {
    %c0_i32 = arith.constant 0 : i32
    %c0_i32_0 = arith.constant 0 : i32
    return %arg0, %c0_i32 : i32, i32
  }
  func.func @transform_1(%arg0: i32) -> (i32, i32) {
    %c0_i32 = arith.constant 0 : i32
    %c0_i32_0 = arith.constant 0 : i32
    return %arg0, %c0_i32 : i32, i32
  }
  func.func @transform_2(%arg0: i32) -> (i32, i32) {
    %c0_i32 = arith.constant 0 : i32
    %c0_i32_0 = arith.constant 0 : i32
    return %arg0, %c0_i32 : i32, i32
  }
  func.func @transform_3(%arg0: i32) -> (i32, i32) {
    %c0_i32 = arith.constant 0 : i32
    %c0_i32_0 = arith.constant 0 : i32
    return %arg0, %c0_i32 : i32, i32
  }
}

</mosaic_0001>

<llo_original>
// kernel: tpu_custom_call.1
$region0: #{tpu_custom_call.1}
  #allocation0 [shape = 'u32[]', space=smem, size = 0x4, offset = 0x4, fixed_abs, tag = 'smem constant byte address 0x4 - core index']
  #allocation1 [shape = 'u32[144,128]{1,0:T(1,128)}', space=vmem, size = 0x12000, scoped, tag = 'internal scratch']
  %s0 = inlined_call_operand.vmem [shape: f32[6,96], index: 0, kind: input, shape index: {}]
  %s1 = inlined_call_operand.hbm [shape: f32[6,96], index: 1, kind: input, shape index: {}]
  %s2 = inlined_call_operand.vmem [shape: f32[6,1], index: 2, kind: input, shape index: {}]
  %s3 = inlined_call_operand.vmem [shape: f32[6,1], index: 3, kind: output, shape index: {}]
  %s4 = sld [smem:[#allocation0]]
  $region26: #{tpu_custom_call.1} parent=0
    _
  %s6 = ssub.s32 1, %s4
  %s7 = scalar_select 0, %s6, %s4
  $region1: #{tpu_custom_call.1} parent=0
    #allocation2 [shape = 'u8[4096]{0}', space=vmem, size = 0x1000, scoped, tag = 'input window, operand 1, single buffered']
    #allocation3 [shape = 's32[1]{0}', space=sflag, size = 0x4, scoped, tag = 'scoped memory for tpu_custom_call.1']
    %8 = vsyncpa [#allocation3], 0
    // Predicated region
    $region2: #{tpu_custom_call.1} parent=1 // pred_check
      _
    $region3: #{tpu_custom_call.1} parent=1 // pred_check_branch
      %10 = sbr.rel (0) target = $region5
    $region4: #{tpu_custom_call.1} parent=1 // pred_region
      _
    $region5: #{tpu_custom_call.1} parent=1 // pred_fallthru
      _
    // Predicated region
    $region6: #{tpu_custom_call.1} parent=1 // pred_check
      _
    $region7: #{tpu_custom_call.1} parent=1 // pred_check_branch
      %12 = sbr.rel (0) target = $region9
    $region8: #{tpu_custom_call.1} parent=1 // pred_region
      %s14 = ssub.s32 128, 128
      %15 = vsyncadd [#allocation3], %s14
      %s17 = sshll.u32 [#allocation2], 4
      %s18 = int_to_ptr.vmem [resolvable:$true] %s17
      %20 = dma.hbm_to_vmem [thread:$0]  %s1, 128, %s18, [#allocation3]
    $region9: #{tpu_custom_call.1} parent=1 // pred_fallthru
      _
    // Predicated region
    $region10: #{tpu_custom_call.1} parent=1 // pred_check
      _
    $region11: #{tpu_custom_call.1} parent=1 // pred_check_branch
      %22 = sbr.rel (0) target = $region13
    $region12: #{tpu_custom_call.1} parent=1 // pred_region
      _
    $region13: #{tpu_custom_call.1} parent=1 // pred_fallthru
      _
    // Predicated region
    $region14: #{tpu_custom_call.1} parent=1 // pred_check
      _
    $region15: #{tpu_custom_call.1} parent=1 // pred_check_branch
      %24 = sbr.rel (0) target = $region17
    $region16: #{tpu_custom_call.1} parent=1 // pred_region
      %25 = dma.done [#allocation3], 128
    $region17: #{tpu_custom_call.1} parent=1 // pred_fallthru
      _
    %v26 = vld [vmem:[%s0] sm:$0xff]
    %v27 = vld [vmem:[#allocation2] sm:$0xff]
    %v28 = vld [vmem:[%s2] sm:$0xff]
    %v29 = vsub.f32 %v26, %v27
    %v30 = vadd.f32 %v29, 1e-06
    %v31 = vmul.f32 %v30, %v30
    %vm32 = vcmask 785408
    %v33 = vsel %vm32, %v31, 0.0
    %34 = vadd.xlane.f32.xlu0 %v33
    %v35 = vpop.xlane.xlu0 %34
    %v36 = vrsqrt.pop %v35
    %v37 = vmul.f32 %v35, %v36
    %vm38 = vcmp.eq.f32.partialorder %v35, inf
    %v39 = vsel %vm38, %v35, %v37
    %vm40 = vcmp.eq.f32.partialorder %v35, 0.0
    %v41 = vand.u32 %v35, 2147483648
    %v42 = vsel %vm40, %v41, %v39
    %v43 = vsub.f32 1.0, %v42
    %v44 = vmax.f32 %v43, 0.0
    %v45 = vmul.f32 %v28, %v35
    %v46 = vsub.f32 1.0, %v28
    %v47 = vmul.f32 %v44, %v44
    %v48 = vmul.f32 %v46, %v47
    %v49 = vadd.f32 %v45, %v48
    %s50 = smul.u32 0, 8
    %v51 = vlaneseq
    %v52 = vshrl.u32 %v51, 7
    %v53 = vstv %s50
    %v54 = vadd.s32 %v53, %v52
    %vm55 = vcmp.lt.s32.totalorder %v54, 6
    %v56 = vsel %vm55, %v49, 0.0
    %vm57 = vcmask 7168
    %58 = vst.msk [vmem:[%s3] sm:$0xff] %vm57, %v56
    // Predicated region
    $region18: #{tpu_custom_call.1} parent=1 // pred_check
      _
    $region19: #{tpu_custom_call.1} parent=1 // pred_check_branch
      %60 = sbr.rel (0) target = $region21
    $region20: #{tpu_custom_call.1} parent=1 // pred_region
      _
    $region21: #{tpu_custom_call.1} parent=1 // pred_fallthru
      _
    // Predicated region
    $region22: #{tpu_custom_call.1} parent=1 // pred_check
      _
    $region23: #{tpu_custom_call.1} parent=1 // pred_check_branch
      %62 = sbr.rel (0) target = $region25
    $region24: #{tpu_custom_call.1} parent=1 // pred_region
      _
    $region25: #{tpu_custom_call.1} parent=1 // pred_fallthru
      _
    %63 = vsyncpa [#allocation3], 1

</llo_original>
